<compile_context>
chip_gen: v7x
topology: tpu7x:2x2x1
jax: 0.10.0
libtpu: 0.0.40
codegen_flags: <defaults>
</compile_context>

<pallas_src>
import functools

import jax
import jax.numpy as jnp
from jax.experimental import pallas as pl
from jax.experimental.pallas import tpu as pltpu


def _round_up(v, m):
    return ((v + m - 1) // m) * m


def _sublane_multiple(dtype):
    # f32 -> 8, bf16 -> 16, int8/fp8 -> 32 (sub-32-bit dtypes pack sublanes).
    return max(8, 32 // jnp.dtype(dtype).itemsize)


# ---------------------------------------------------------------------------
# Pass 1: per-row (row = one (n, c) pair) shifted sum / sum-of-squares over HW.
# Grid = (row_tiles, hw_tiles); HW is the reduction axis (last, "arbitrary");
# the (tr, 1) outputs stay resident across it.
# ---------------------------------------------------------------------------
def _make_stats_kernel(hw, thw):
    need_mask = (hw % thw) != 0

    def kernel(x_ref, shift_ref, sum_ref, sq_ref):
        h = pl.program_id(1)
        x = x_ref[...].astype(jnp.float32)              # (tr, thw)

        @pl.when(h == 0)
        def _():
            shift_ref[...] = x[:, 0:1]                  # per-row shift proxy

        xs = x - shift_ref[...]
        if need_mask:                                   # ragged last HW tile
            col = jax.lax.broadcasted_iota(jnp.int32, xs.shape, 1) + h * thw
            xs = jnp.where(col < hw, xs, 0.0)
        psum = jnp.sum(xs, axis=1, keepdims=True)       # (tr, 1)
        psq = jnp.sum(xs * xs, axis=1, keepdims=True)

        @pl.when(h == 0)
        def _():
            sum_ref[...] = psum
            sq_ref[...] = psq

        @pl.when(h > 0)
        def _():
            sum_ref[...] = sum_ref[...] + psum
            sq_ref[...] = sq_ref[...] + psq

    return kernel


# ---------------------------------------------------------------------------
# Pass 2: fused normalize epilogue  z = x * scale + shift with per-row (tr, 1)
# scale/shift broadcast over the lane (HW) axis.  Ragged boundary blocks are
# handled by Pallas (out-of-bounds lanes/rows are never written back), so no
# in-kernel masking and no wrapper pad/slice.
# ---------------------------------------------------------------------------
def _apply_kernel(x_ref, scale_ref, shift_ref, o_ref):
    x = x_ref[...].astype(jnp.float32)
    o_ref[...] = (x * scale_ref[...] + shift_ref[...]).astype(o_ref.dtype)


@functools.partial(
    jax.jit,
    static_argnames=("eps", "row_tile", "lane_tile", "alias_input"))
def switchable_norm(x_nchw, gamma, beta, w, *, eps=1e-8,
                    row_tile=256, lane_tile=None, alias_input=False):
    """SN forward (training-mode statistics).  x_nchw: (N, C, H, W)."""
    N, C, H, W = x_nchw.shape
    HW = H * W
    R = N * C
    out_dtype = x_nchw.dtype
    itemsize = jnp.dtype(x_nchw.dtype).itemsize
    sub = _sublane_multiple(x_nchw.dtype)

    # ---- tiling: lane-dense (128-multiple) HW tiles, dtype-aware row tiles --
    if lane_tile is None:
        lane_tile = 2048 * (4 // itemsize)   # ~2 MiB input blocks per step
    n_hw = max(1, pl.cdiv(HW, lane_tile))
    thw = _round_up(pl.cdiv(HW, n_hw), 128)  # balanced, minimal dead lanes
    # >= 2 row tiles when possible so v7x's second TensorCore has work.
    n_r = max(2 if R > sub else 1, pl.cdiv(R, row_tile))
    tr = _round_up(pl.cdiv(R, n_r), sub)
    grid = (pl.cdiv(R, tr), pl.cdiv(HW, thw))

    x2d = x_nchw.reshape(R, HW)              # no padding, no extra HBM passes

    # ---- pass 1: per-(n, c) shifted sum / sum-of-squares over HW ------------
    row_shift, row_sum, row_sq = pl.pallas_call(
        _make_stats_kernel(HW, thw),
        out_shape=(jax.ShapeDtypeStruct((R, 1), jnp.float32),
                   jax.ShapeDtypeStruct((R, 1), jnp.float32),
                   jax.ShapeDtypeStruct((R, 1), jnp.float32)),
        grid=grid,
        in_specs=[pl.BlockSpec((tr, thw), lambda i, h: (i, h))],
        out_specs=(pl.BlockSpec((tr, 1), lambda i, h: (i, 0)),
                   pl.BlockSpec((tr, 1), lambda i, h: (i, 0)),
                   pl.BlockSpec((tr, 1), lambda i, h: (i, 0))),
        compiler_params=pltpu.CompilerParams(
            dimension_semantics=("parallel", "arbitrary")),
    )(x2d)

    # ---- tiny O(N*C) stat combine + parameter folding (JAX glue, jitted) ----
    hw_f = jnp.float32(HW)
    s0 = row_shift[:, 0].reshape(N, C)
    ss = row_sum[:, 0].reshape(N, C)
    sq = row_sq[:, 0].reshape(N, C)

    # Per-row mean and centered second moment (shifted sums -> no catastrophic
    # cancellation even for large HW with non-zero-mean activations).
    mean_nc = s0 + ss / hw_f                                    # (N, C)
    m2_nc = jnp.maximum(sq - ss * ss / hw_f, 0.0)               # (N, C)

    # IN: per (n, c), unbiased (ddof=1) to match torch.var default.
    in_mean = mean_nc
    in_var = m2_nc / float(max(HW - 1, 1))

    # BN: per c over (n, h, w) — exact merge of per-row moments.
    bn_mean = jnp.mean(mean_nc, axis=0)                         # (C,)
    bn_m2 = (jnp.sum(m2_nc, axis=0)
             + hw_f * jnp.sum((mean_nc - bn_mean[None, :]) ** 2, axis=0))
    bn_var = bn_m2 / float(max(N * HW - 1, 1))

    # LN: per n over (c, h, w).
    ln_mean = jnp.mean(mean_nc, axis=1)                         # (N,)
    ln_m2 = (jnp.sum(m2_nc, axis=1)
             + hw_f * jnp.sum((mean_nc - ln_mean[:, None]) ** 2, axis=1))
    ln_var = ln_m2 / float(max(C * HW - 1, 1))

    ws = jax.nn.softmax(w.astype(jnp.float32))
    mean = (ws[0] * bn_mean[None, :] + ws[1] * ln_mean[:, None]
            + ws[2] * in_mean)                                  # (N, C)
    var = (ws[0] * bn_var[None, :] + ws[1] * ln_var[:, None]
           + ws[2] * in_var)                                    # (N, C)

    inv_std = jax.lax.rsqrt(var + jnp.float32(eps))
    g = gamma.reshape(1, C).astype(jnp.float32)
    b = beta.reshape(1, C).astype(jnp.float32)
    scale_rows = (g * inv_std).reshape(R, 1)                    # (R, 1)
    shift_rows = (b - mean * (g * inv_std)).reshape(R, 1)       # (R, 1)

    # ---- pass 2: stream x again and apply fused scale/shift -----------------
    extra = {}
    if alias_input and out_dtype == x2d.dtype:
        # Reuse x's HBM buffer for the output (only profitable when x is dead
        # after this call, e.g. donated at the jit boundary).
        extra["input_output_aliases"] = {0: 0}
    out2d = pl.pallas_call(
        _apply_kernel,
        out_shape=jax.ShapeDtypeStruct((R, HW), out_dtype),
        grid=grid,
        in_specs=[pl.BlockSpec((tr, thw), lambda i, h: (i, h)),
                  pl.BlockSpec((tr, 1), lambda i, h: (i, 0)),
                  pl.BlockSpec((tr, 1), lambda i, h: (i, 0))],
        out_specs=pl.BlockSpec((tr, thw), lambda i, h: (i, h)),
        compiler_params=pltpu.CompilerParams(
            dimension_semantics=("parallel", "parallel")),
        **extra,
    )(x2d, scale_rows, shift_rows)

    return out2d.reshape(N, C, H, W)


def ref_switchable_norm(x, gamma, beta, w, eps=1e-8):
    """Pure-JAX reference matching the PyTorch module (training mode)."""
    bn_mean = jnp.mean(x, axis=(0, 2, 3), keepdims=True)
    bn_var = jnp.var(x, axis=(0, 2, 3), keepdims=True, ddof=1)
    ln_mean = jnp.mean(x, axis=(1, 2, 3), keepdims=True)
    ln_var = jnp.var(x, axis=(1, 2, 3), keepdims=True, ddof=1)
    in_mean = jnp.mean(x, axis=(2, 3), keepdims=True)
    in_var = jnp.var(x, axis=(2, 3), keepdims=True, ddof=1)
    ws = jax.nn.softmax(w)
    mean = bn_mean * ws[0] + ln_mean * ws[1] + in_mean * ws[2]
    var = bn_var * ws[0] + ln_var * ws[1] + in_var * ws[2]
    C = x.shape[1]
    return ((x - mean) / jnp.sqrt(var + eps) * gamma.reshape(1, C, 1, 1)
            + beta.reshape(1, C, 1, 1))


if __name__ == "__main__":
    key = jax.random.PRNGKey(0)
    kx, kg, kb, kw = jax.random.split(key, 4)

    N, C, H, W = 2, 4, 16, 16
    # Non-zero-mean data to exercise the numerically hard (shifted-moment) path.
    x = 3.0 + jax.random.normal(kx, (N, C, H, W), dtype=jnp.float32)
    gamma = 1.0 + 0.1 * jax.random.normal(kg, (1, C, 1, 1), dtype=jnp.float32)
    beta = 0.1 * jax.random.normal(kb, (1, C, 1, 1), dtype=jnp.float32)
    w = jax.random.normal(kw, (3,), dtype=jnp.float32)

    out = switchable_norm(x, gamma, beta, w, eps=1e-8)
    out = jax.block_until_ready(out)

    ref = ref_switchable_norm(x, gamma, beta, w, eps=1e-8)
    assert out.shape == (N, C, H, W)
    err = jnp.max(jnp.abs(out - ref))
    assert jnp.allclose(out, ref, atol=1e-4, rtol=1e-4), f"max abs err = {err}"

    print("KERNEL_OK")
</pallas_src>

<mosaic_0001>
module attributes {stable_mosaic.version = 11 : i64} {
  func.func @kernel(%arg0: i32, %arg1: i32, %arg2: memref<8x256xf32, #tpu.memory_space<vmem>>, %arg3: memref<8x1xf32, #tpu.memory_space<vmem>>, %arg4: memref<8x1xf32, #tpu.memory_space<vmem>>, %arg5: memref<8x1xf32, #tpu.memory_space<vmem>>) attributes {dimension_semantics = [#tpu.dimension_semantics<parallel>, #tpu.dimension_semantics<arbitrary>], iteration_bounds = array<i64: 1, 1>, scalar_prefetch = 0 : i64, scratch_operands = 0 : i64, tpu.core_type = #tpu.core_type<tc>, window_params = [{transform_indices = @transform_0, window_bounds = array<i64: 8, 256>}, {transform_indices = @transform_1, window_bounds = array<i64: 8, 1>}, {transform_indices = @transform_2, window_bounds = array<i64: 8, 1>}, {transform_indices = @transform_3, window_bounds = array<i64: 8, 1>}]} {
    %c0 = arith.constant 0 : index
    %c0_0 = arith.constant 0 : index
    %0 = vector.load %arg2[%c0, %c0_0] : memref<8x256xf32, #tpu.memory_space<vmem>>, vector<8x256xf32>
    %c0_i32 = arith.constant 0 : i32
    %1 = arith.cmpi eq, %arg1, %c0_i32 : i32
    %2 = arith.extui %1 : i1 to i32
    %c0_i32_1 = arith.constant 0 : i32
    %3 = arith.cmpi ne, %2, %c0_i32_1 : i32
    scf.if %3 {
      %18 = vector.extract_strided_slice %0 {offsets = [0, 0], sizes = [8, 1], strides = [1, 1]} : vector<8x256xf32> to vector<8x1xf32>
      %c0_9 = arith.constant 0 : index
      %c0_10 = arith.constant 0 : index
      %19 = vector.load %arg3[%c0_9, %c0_10] : memref<8x1xf32, #tpu.memory_space<vmem>>, vector<8x1xf32>
      tpu.vector_store %arg3[%c0_9, %c0_10], %18 {strides = array<i32>} : memref<8x1xf32, #tpu.memory_space<vmem>>, vector<8x1xf32>,
    } else {
    }
    %c0_2 = arith.constant 0 : index
    %c0_3 = arith.constant 0 : index
    %4 = vector.load %arg3[%c0_2, %c0_3] : memref<8x1xf32, #tpu.memory_space<vmem>>, vector<8x1xf32>
    %5 = vector.broadcast %4 : vector<8x1xf32> to vector<8x256xf32>
    %6 = arith.subf %0, %5 : vector<8x256xf32>
    %cst = arith.constant dense<0.000000e+00> : vector<8xf32>
    %7 = vector.multi_reduction <add>, %6, %cst [1] : vector<8x256xf32> to vector<8xf32>
    %8 = vector.shape_cast %7 : vector<8xf32> to vector<8x1xf32>
    %9 = arith.mulf %6, %6 : vector<8x256xf32>
    %cst_4 = arith.constant dense<0.000000e+00> : vector<8xf32>
    %10 = vector.multi_reduction <add>, %9, %cst_4 [1] : vector<8x256xf32> to vector<8xf32>
    %11 = vector.shape_cast %10 : vector<8xf32> to vector<8x1xf32>
    %c0_i32_5 = arith.constant 0 : i32
    %12 = arith.cmpi eq, %arg1, %c0_i32_5 : i32
    %13 = arith.extui %12 : i1 to i32
    %c0_i32_6 = arith.constant 0 : i32
    %14 = arith.cmpi ne, %13, %c0_i32_6 : i32
    scf.if %14 {
      %c0_9 = arith.constant 0 : index
      %c0_10 = arith.constant 0 : index
      %18 = vector.load %arg4[%c0_9, %c0_10] : memref<8x1xf32, #tpu.memory_space<vmem>>, vector<8x1xf32>
      tpu.vector_store %arg4[%c0_9, %c0_10], %8 {strides = array<i32>} : memref<8x1xf32, #tpu.memory_space<vmem>>, vector<8x1xf32>,
      %c0_11 = arith.constant 0 : index
      %c0_12 = arith.constant 0 : index
      %19 = vector.load %arg5[%c0_11, %c0_12] : memref<8x1xf32, #tpu.memory_space<vmem>>, vector<8x1xf32>
      tpu.vector_store %arg5[%c0_11, %c0_12], %11 {strides = array<i32>} : memref<8x1xf32, #tpu.memory_space<vmem>>, vector<8x1xf32>,
    } else {
    }
    %c0_i32_7 = arith.constant 0 : i32
    %15 = arith.cmpi sgt, %arg1, %c0_i32_7 : i32
    %16 = arith.extui %15 : i1 to i32
    %c0_i32_8 = arith.constant 0 : i32
    %17 = arith.cmpi ne, %16, %c0_i32_8 : i32
    scf.if %17 {
      %c0_9 = arith.constant 0 : index
      %c0_10 = arith.constant 0 : index
      %18 = vector.load %arg4[%c0_9, %c0_10] : memref<8x1xf32, #tpu.memory_space<vmem>>, vector<8x1xf32>
      %19 = arith.addf %18, %8 : vector<8x1xf32>
      %c0_11 = arith.constant 0 : index
      %c0_12 = arith.constant 0 : index
      %20 = vector.load %arg4[%c0_11, %c0_12] : memref<8x1xf32, #tpu.memory_space<vmem>>, vector<8x1xf32>
      tpu.vector_store %arg4[%c0_11, %c0_12], %19 {strides = array<i32>} : memref<8x1xf32, #tpu.memory_space<vmem>>, vector<8x1xf32>,
      %c0_13 = arith.constant 0 : index
      %c0_14 = arith.constant 0 : index
      %21 = vector.load %arg5[%c0_13, %c0_14] : memref<8x1xf32, #tpu.memory_space<vmem>>, vector<8x1xf32>
      %22 = arith.addf %21, %11 : vector<8x1xf32>
      %c0_15 = arith.constant 0 : index
      %c0_16 = arith.constant 0 : index
      %23 = vector.load %arg5[%c0_15, %c0_16] : memref<8x1xf32, #tpu.memory_space<vmem>>, vector<8x1xf32>
      tpu.vector_store %arg5[%c0_15, %c0_16], %22 {strides = array<i32>} : memref<8x1xf32, #tpu.memory_space<vmem>>, vector<8x1xf32>,
    } else {
    }
    return
  }
  func.func @transform_0(%arg0: i32, %arg1: i32) -> (i32, i32) {
    %c0_i32 = arith.constant 0 : i32
    return %arg0, %arg1 : i32, i32
  }
  func.func @transform_1(%arg0: i32, %arg1: i32) -> (i32, i32) {
    %c0_i32 = arith.constant 0 : i32
    %c0_i32_0 = arith.constant 0 : i32
    return %arg0, %c0_i32 : i32, i32
  }
  func.func @transform_2(%arg0: i32, %arg1: i32) -> (i32, i32) {
    %c0_i32 = arith.constant 0 : i32
    %c0_i32_0 = arith.constant 0 : i32
    return %arg0, %c0_i32 : i32, i32
  }
  func.func @transform_3(%arg0: i32, %arg1: i32) -> (i32, i32) {
    %c0_i32 = arith.constant 0 : i32
    %c0_i32_0 = arith.constant 0 : i32
    return %arg0, %c0_i32 : i32, i32
  }
}

module attributes {stable_mosaic.version = 11 : i64} {
  func.func @_apply_kernel(%arg0: i32, %arg1: i32, %arg2: memref<8x256xf32, #tpu.memory_space<vmem>>, %arg3: memref<8x1xf32, #tpu.memory_space<vmem>>, %arg4: memref<8x1xf32, #tpu.memory_space<vmem>>, %arg5: memref<8x256xf32, #tpu.memory_space<vmem>>) attributes {dimension_semantics = [#tpu.dimension_semantics<parallel>, #tpu.dimension_semantics<parallel>], iteration_bounds = array<i64: 1, 1>, scalar_prefetch = 0 : i64, scratch_operands = 0 : i64, tpu.core_type = #tpu.core_type<tc>, window_params = [{transform_indices = @transform_0, window_bounds = array<i64: 8, 256>}, {transform_indices = @transform_1, window_bounds = array<i64: 8, 1>}, {transform_indices = @transform_2, window_bounds = array<i64: 8, 1>}, {transform_indices = @transform_3, window_bounds = array<i64: 8, 256>}]} {
    %c0 = arith.constant 0 : index
    %c0_0 = arith.constant 0 : index
    %0 = vector.load %arg2[%c0, %c0_0] : memref<8x256xf32, #tpu.memory_space<vmem>>, vector<8x256xf32>
    %c0_1 = arith.constant 0 : index
    %c0_2 = arith.constant 0 : index
    %1 = vector.load %arg3[%c0_1, %c0_2] : memref<8x1xf32, #tpu.memory_space<vmem>>, vector<8x1xf32>
    %2 = vector.broadcast %1 : vector<8x1xf32> to vector<8x256xf32>
    %3 = arith.mulf %0, %2 : vector<8x256xf32>
    %c0_3 = arith.constant 0 : index
    %c0_4 = arith.constant 0 : index
    %4 = vector.load %arg4[%c0_3, %c0_4] : memref<8x1xf32, #tpu.memory_space<vmem>>, vector<8x1xf32>
    %5 = vector.broadcast %4 : vector<8x1xf32> to vector<8x256xf32>
    %6 = arith.addf %3, %5 : vector<8x256xf32>
    %c0_5 = arith.constant 0 : index
    %c0_6 = arith.constant 0 : index
    %7 = vector.load %arg5[%c0_5, %c0_6] : memref<8x256xf32, #tpu.memory_space<vmem>>, vector<8x256xf32>
    tpu.vector_store %arg5[%c0_5, %c0_6], %6 {strides = array<i32>} : memref<8x256xf32, #tpu.memory_space<vmem>>, vector<8x256xf32>,
    return
  }
  func.func @transform_0(%arg0: i32, %arg1: i32) -> (i32, i32) {
    %c0_i32 = arith.constant 0 : i32
    return %arg0, %arg1 : i32, i32
  }
  func.func @transform_1(%arg0: i32, %arg1: i32) -> (i32, i32) {
    %c0_i32 = arith.constant 0 : i32
    %c0_i32_0 = arith.constant 0 : i32
    return %arg0, %c0_i32 : i32, i32
  }
  func.func @transform_2(%arg0: i32, %arg1: i32) -> (i32, i32) {
    %c0_i32 = arith.constant 0 : i32
    %c0_i32_0 = arith.constant 0 : i32
    return %arg0, %c0_i32 : i32, i32
  }
  func.func @transform_3(%arg0: i32, %arg1: i32) -> (i32, i32) {
    %c0_i32 = arith.constant 0 : i32
    return %arg0, %arg1 : i32, i32
  }
}

</mosaic_0001>

<llo_original>
// kernel: switchable_norm.3
$region0: #{switchable_norm.3}
  #allocation0 [shape = 'u32[]', space=smem, size = 0x4, offset = 0x4, fixed_abs, tag = 'smem constant byte address 0x4 - core index']
  #allocation1 [shape = 'u32[144,128]{1,0:T(1,128)}', space=vmem, size = 0x12000, scoped, tag = 'internal scratch']
  %s0 = inlined_call_operand.vmem [shape: f32[8,256], index: 0, kind: input, shape index: {}]
  %s1 = inlined_call_operand.vmem [shape: f32[8,1], index: 1, kind: input, shape index: {}]
  %s2 = inlined_call_operand.vmem [shape: f32[8,1], index: 2, kind: input, shape index: {}]
  %s3 = inlined_call_operand.vmem [shape: f32[8,256], index: 3, kind: output, shape index: {}]
  %s4 = sld [smem:[#allocation0]]
  $region22: #{switchable_norm.3} parent=0
    _
  %s6 = ssub.s32 1, %s4
  %s7 = scalar_select 0, %s6, %s4
  // Predicated region
  $region2: #{switchable_norm.3} parent=0 // pred_check
    _
  $region3: #{switchable_norm.3} parent=0 // pred_check_branch
    %9 = sbr.rel (0) target = $region5
  $region4: #{switchable_norm.3} parent=0 // pred_region
    _
  $region5: #{switchable_norm.3} parent=0 // pred_fallthru
    _
  // Predicated region
  $region6: #{switchable_norm.3} parent=0 // pred_check
    _
  $region7: #{switchable_norm.3} parent=0 // pred_check_branch
    %11 = sbr.rel (0) target = $region9
  $region8: #{switchable_norm.3} parent=0 // pred_region
    _
  $region9: #{switchable_norm.3} parent=0 // pred_fallthru
    _
  // Predicated region
  $region10: #{switchable_norm.3} parent=0 // pred_check
    _
  $region11: #{switchable_norm.3} parent=0 // pred_check_branch
    %13 = sbr.rel (0) target = $region13
  $region12: #{switchable_norm.3} parent=0 // pred_region
    _
  $region13: #{switchable_norm.3} parent=0 // pred_fallthru
    _
  %v14 = vld [vmem:[%s0] sm:$0xff]
  %v15 = vld [vmem:[%s0 + $0x8] sm:$0xff]
  %v16 = vld [vmem:[%s1] sm:$0xff]
  %18 = vset.pattern.permute.xlu0 0
  %19 = vperm.xlu0 %18, %v16
  %v20 = vpop.permute.xlu0 %19
  %v22 = vmul.f32 %v14, %v20
  %v23 = vmul.f32 %v15, %v20
  %v24 = vld [vmem:[%s2] sm:$0xff]
  %26 = vset.pattern.permute.xlu0 0
  %27 = vperm.xlu0 %26, %v24
  %v28 = vpop.permute.xlu0 %27
  %v30 = vadd.f32 %v22, %v28
  %v31 = vadd.f32 %v23, %v28
  %32 = vst [vmem:[%s3] sm:$0xff] %v30
  %33 = vst [vmem:[%s3 + $0x8] sm:$0xff] %v31
  // Predicated region
  $region14: #{switchable_norm.3} parent=0 // pred_check
    _
  $region15: #{switchable_norm.3} parent=0 // pred_check_branch
    %35 = sbr.rel (0) target = $region17
  $region16: #{switchable_norm.3} parent=0 // pred_region
    _
  $region17: #{switchable_norm.3} parent=0 // pred_fallthru
    _
  // Predicated region
  $region18: #{switchable_norm.3} parent=0 // pred_check
    _
  $region19: #{switchable_norm.3} parent=0 // pred_check_branch
    %37 = sbr.rel (0) target = $region21
  $region20: #{switchable_norm.3} parent=0 // pred_region
    _
  $region21: #{switchable_norm.3} parent=0 // pred_fallthru
    _

// kernel: switchable_norm.2
$region0: #{switchable_norm.2}
  #allocation0 [shape = 'u32[]', space=smem, size = 0x4, offset = 0x4, fixed_abs, tag = 'smem constant byte address 0x4 - core index']
  #allocation1 [shape = 'u32[144,128]{1,0:T(1,128)}', space=vmem, size = 0x12000, scoped, tag = 'internal scratch']
  %s0 = inlined_call_operand.vmem [shape: f32[8,256], index: 0, kind: input, shape index: {}]
  %s1 = inlined_call_operand.vmem [shape: f32[8,1], index: 1, kind: output, shape index: {0}]
  %s2 = inlined_call_operand.vmem [shape: f32[8,1], index: 2, kind: output, shape index: {1}]
  %s3 = inlined_call_operand.vmem [shape: f32[8,1], index: 3, kind: output, shape index: {2}]
  %4 = xla_tuple %s1, %s2, %s3
  %s5 = sld [smem:[#allocation0]]
  $region42: #{switchable_norm.2} parent=0
    _
  %s7 = ssub.s32 1, %s5
  %s8 = scalar_select 0, %s7, %s5
  // Predicated region
  $region2: #{switchable_norm.2} parent=0 // pred_check
    _
  $region3: #{switchable_norm.2} parent=0 // pred_check_branch
    %10 = sbr.rel (0) target = $region5
  $region4: #{switchable_norm.2} parent=0 // pred_region
    _
  $region5: #{switchable_norm.2} parent=0 // pred_fallthru
    _
  %v11 = vld [vmem:[%s0] sm:$0xff]
  %v12 = vld [vmem:[%s0 + $0x8] sm:$0xff]
  %p13 = scmp.eq.s32.totalorder 0, 0
  // Predicated region
  $region6: #{switchable_norm.2} parent=0 // pred_check
    %p14 = pneg %p13
  $region7: #{switchable_norm.2} parent=0 // pred_check_branch
    %16 = sbr.rel (%p14) target = $region9
  $region8: #{switchable_norm.2} parent=0 // pred_region
    %vm17 = vcmask 7168
    %18 = vst.msk [vmem:[%s1] sm:$0xff] %vm17, %v11
  $region9: #{switchable_norm.2} parent=0 // pred_fallthru
    _
  %v19 = vld [vmem:[%s1] sm:$0xff]
  %21 = vset.pattern.permute.xlu0 0
  %22 = vperm.xlu0 %21, %v19
  %v23 = vpop.permute.xlu0 %22
  %v25 = vsub.f32 %v11, %v23
  %v26 = vsub.f32 %v12, %v23
  %v27 = vadd.f32 %v25, %v26
  %28 = vadd.xlane.f32.xlu0 %v27
  %v29 = vpop.xlane.xlu0 %28
  %v30 = vmul.f32 %v25, %v25
  %v31 = vmul.f32 %v26, %v26
  %v32 = vadd.f32 %v30, %v31
  %33 = vadd.xlane.f32.xlu0 %v32
  %v34 = vpop.xlane.xlu0 %33
  // Predicated region
  $region10: #{switchable_norm.2} parent=0 // pred_check
    %p35 = pneg %p13
  $region11: #{switchable_norm.2} parent=0 // pred_check_branch
    %37 = sbr.rel (%p35) target = $region13
  $region12: #{switchable_norm.2} parent=0 // pred_region
    %vm38 = vcmask 7168
    %39 = vst.msk [vmem:[%s2] sm:$0xff] %vm38, %v29
    %40 = vst.msk [vmem:[%s3] sm:$0xff] %vm38, %v34
  $region13: #{switchable_norm.2} parent=0 // pred_fallthru
    _
  %p41 = scmp.gt.s32.totalorder 0, 0
  // Predicated region
  $region14: #{switchable_norm.2} parent=0 // pred_check
    %p42 = pneg %p41
  $region15: #{switchable_norm.2} parent=0 // pred_check_branch
    %44 = sbr.rel (%p42) target = $region17
  $region16: #{switchable_norm.2} parent=0 // pred_region
    %v45 = vld [vmem:[%s2] sm:$0xff]
    %v46 = vadd.f32 %v45, %v29
    %vm47 = vcmask 7168
    %48 = vst.msk [vmem:[%s2] sm:$0xff] %vm47, %v46
    %v49 = vld [vmem:[%s3] sm:$0xff]
    %v50 = vadd.f32 %v49, %v34
    %51 = vst.msk [vmem:[%s3] sm:$0xff] %vm47, %v50
  $region17: #{switchable_norm.2} parent=0 // pred_fallthru
    _
  // Predicated region
  $region18: #{switchable_norm.2} parent=0 // pred_check
    _
  $region19: #{switchable_norm.2} parent=0 // pred_check_branch
    %53 = sbr.rel (0) target = $region21
  $region20: #{switchable_norm.2} parent=0 // pred_region
    _
  $region21: #{switchable_norm.2} parent=0 // pred_fallthru
    _
  // Predicated region
  $region22: #{switchable_norm.2} parent=0 // pred_check
    _
  $region23: #{switchable_norm.2} parent=0 // pred_check_branch
    %55 = sbr.rel (0) target = $region25
  $region24: #{switchable_norm.2} parent=0 // pred_region
    _
  $region25: #{switchable_norm.2} parent=0 // pred_fallthru
    _
  // Predicated region
  $region26: #{switchable_norm.2} parent=0 // pred_check
    _
  $region27: #{switchable_norm.2} parent=0 // pred_check_branch
    %57 = sbr.rel (0) target = $region29
  $region28: #{switchable_norm.2} parent=0 // pred_region
    _
  $region29: #{switchable_norm.2} parent=0 // pred_fallthru
    _
  // Predicated region
  $region30: #{switchable_norm.2} parent=0 // pred_check
    _
  $region31: #{switchable_norm.2} parent=0 // pred_check_branch
    %59 = sbr.rel (0) target = $region33
  $region32: #{switchable_norm.2} parent=0 // pred_region
    _
  $region33: #{switchable_norm.2} parent=0 // pred_fallthru
    _
  // Predicated region
  $region34: #{switchable_norm.2} parent=0 // pred_check
    _
  $region35: #{switchable_norm.2} parent=0 // pred_check_branch
    %61 = sbr.rel (0) target = $region37
  $region36: #{switchable_norm.2} parent=0 // pred_region
    _
  $region37: #{switchable_norm.2} parent=0 // pred_fallthru
    _
  // Predicated region
  $region38: #{switchable_norm.2} parent=0 // pred_check
    _
  $region39: #{switchable_norm.2} parent=0 // pred_check_branch
    %63 = sbr.rel (0) target = $region41
  $region40: #{switchable_norm.2} parent=0 // pred_region
    _
  $region41: #{switchable_norm.2} parent=0 // pred_fallthru
    _

</llo_original>
